<compile_context>
chip_gen: v5e
topology: v5e:2x2
jax: 0.10.0
libtpu: 0.0.40
codegen_flags: <defaults>
</compile_context>

<pallas_src>
import functools

import jax
import jax.numpy as jnp
from jax.experimental import pallas as pl
from jax.experimental.pallas import tpu as pltpu


# --------------------------------------------------------------------------
# Kernel
# --------------------------------------------------------------------------
def vae_fwd_kernel(x_ref, w_in_ref, w_mlv_ref, w_d1_ref, w_d2_ref, eps_ref,
                   out_ref, *, latent_dim, pad_cols, mxu_dtype):
    """Fused VAE forward for one batch tile.

    Encoder: h = relu(x @ W_in);  [z_m | z_lv] = h @ [W_m | W_lv]
    Reparam: z = z_m + eps * exp(z_lv / 2)
    Decoder: x_hat = relu(z @ W_d1) @ W_d2
    Output : one lane-dense slab [z | z_m | z_lv | x_hat | 0-pad]
    """
    x = x_ref[...].astype(mxu_dtype)

    # ----- Encoder -----
    h = jnp.dot(x, w_in_ref[...], preferred_element_type=jnp.float32)
    h = jnp.maximum(h, 0.0).astype(mxu_dtype)

    # Fused latent projection: one N=2*latent matmul instead of two N=latent.
    zml = jnp.dot(h, w_mlv_ref[...], preferred_element_type=jnp.float32)
    z_m = zml[:, :latent_dim]
    z_lv = zml[:, latent_dim:]

    # ----- Reparametrize (kept in f32) -----
    z = z_m + eps_ref[...] * jnp.exp(z_lv * 0.5)

    # ----- Decoder (K = latent_dim is tiny; amortize via large batch tile) ---
    hd = jnp.dot(z.astype(mxu_dtype), w_d1_ref[...],
                 preferred_element_type=jnp.float32)
    hd = jnp.maximum(hd, 0.0).astype(mxu_dtype)
    x_hat = jnp.dot(hd, w_d2_ref[...], preferred_element_type=jnp.float32)

    # ----- Single lane-dense packed store -----
    pieces = [z, z_m, z_lv, x_hat]
    if pad_cols:
        pieces.append(jnp.zeros((z.shape[0], pad_cols), jnp.float32))
    out_ref[...] = jnp.concatenate(pieces, axis=-1).astype(out_ref.dtype)


# --------------------------------------------------------------------------
# Helpers
# --------------------------------------------------------------------------
def _vmem_capacity_bytes():
    try:
        return int(pltpu.get_tpu_info().vmem_capacity_bytes)
    except Exception:
        return 64 << 20  # conservative (v7x per-TC)


def _single_buffered_spec(shape, index_map):
    """Weight spec: constant index_map, single-buffered (no re-fetch)."""
    try:
        return pl.BlockSpec(shape, index_map, pipeline_mode=pl.Buffered(1))
    except (TypeError, AttributeError):
        return pl.BlockSpec(shape, index_map)


def _default_batch_block(batch, vmem_cap_bytes):
    """Largest multiple-of-8 divisor of `batch`, preferring an even number of
    grid steps (v7x 2-TC sharding). Cap depends on VMEM generation:
    v5e/v6e (128 MiB) allow up to 2048 rows; v7x (64 MiB) caps at 512."""
    if batch % 8 != 0 or batch < 16:
        return batch
    max_rows = 2048 if vmem_cap_bytes >= (96 << 20) else 512
    candidates = (2048, 1024, 512, 256, 128, 64, 32, 16, 8)
    best = None
    for cand in candidates:
        if cand > max_rows or batch % cand != 0:
            continue
        steps = batch // cand
        if steps < 2:
            continue
        if best is None:
            best = cand
        if steps % 2 == 0:
            return cand          # largest tile with an even step count
    return best if best is not None else batch


def prepare_vae_params(params, *, use_bf16_matmul=True):
    """One-time weight prep: fuse the two latent heads and cast for the MXU.

    Do this ONCE (e.g. after init / load), not per forward call, so the cast/
    concat HBM traffic is not paid every step.
    """
    mxu_dtype = jnp.bfloat16 if use_bf16_matmul else jnp.float32
    return dict(
        w_in=params["w_in"].astype(mxu_dtype),
        w_mlv=jnp.concatenate([params["w_m"], params["w_lv"]],
                              axis=1).astype(mxu_dtype),
        w_d1=params["w_d1"].astype(mxu_dtype),
        w_d2=params["w_d2"].astype(mxu_dtype),
    )


# --------------------------------------------------------------------------
# Wrapper
# --------------------------------------------------------------------------
def vae_forward(x, prepared, eps, *, batch_block=None):
    """Run the fused VAE forward Pallas kernel.

    Args:
      x: [B, input_dim] float32
      prepared: output of prepare_vae_params (w_in, w_mlv, w_d1, w_d2),
        each [in_features, out_features], already in the MXU dtype.
      eps: [B, latent_dim] float32 reparametrization noise
      batch_block: rows per grid step (multiple of 8 or the full batch)
    Returns:
      dict(z, z_m, z_lv, x_hat), all float32
    """
    B, input_dim = x.shape
    w_in, w_mlv, w_d1, w_d2 = (prepared["w_in"], prepared["w_mlv"],
                               prepared["w_d1"], prepared["w_d2"])
    hidden_dim = w_in.shape[1]
    latent_dim = w_d1.shape[0]
    assert w_mlv.shape == (hidden_dim, 2 * latent_dim)
    assert w_d2.shape == (hidden_dim, input_dim)
    assert eps.shape == (B, latent_dim)
    mxu_dtype = w_in.dtype

    vmem_cap = _vmem_capacity_bytes()
    bb = batch_block if batch_block is not None else _default_batch_block(
        B, vmem_cap)
    if B % bb != 0:
        raise ValueError(f"batch_block={bb} must divide batch={B}")
    if bb != B and bb % 8 != 0:
        # (8, 128) BlockSpec constraint on the second-minor (sublane) dim.
        raise ValueError(f"batch_block={bb} must be a multiple of 8 (or == B)")
    grid = (B // bb,)

    # Lane-dense packed output: [z | z_m | z_lv | x_hat], padded to a multiple
    # of 128 lanes so the writeback is a single unmasked vst stream.
    used_cols = 3 * latent_dim + input_dim
    padded_cols = ((used_cols + 127) // 128) * 128
    pad_cols = padded_cols - used_cols

    def batch_spec(cols):
        return pl.BlockSpec((bb, cols), lambda i: (i, 0))

    out_shape = jax.ShapeDtypeStruct((B, padded_cols), jnp.float32)

    # Advisory cost hint so XLA schedules surrounding ops around the call.
    flops = 2 * B * (input_dim * hidden_dim
                     + hidden_dim * 2 * latent_dim
                     + latent_dim * hidden_dim
                     + hidden_dim * input_dim)
    weight_bytes = sum(int(w.size) * w.dtype.itemsize
                       for w in (w_in, w_mlv, w_d1, w_d2))
    io_bytes = 4 * B * (input_dim + latent_dim + padded_cols)
    cost = pl.CostEstimate(flops=flops,
                           transcendentals=B * latent_dim,
                           bytes_accessed=weight_bytes + io_bytes)

    # VMEM budget: single-buffered resident weights + double-buffered batch
    # tiles + f32 activation headroom; clamp to ~87% of physical per-core VMEM
    # (leaves room for Mosaic's internal scratch / semaphores).
    tile_io_bytes = 4 * bb * (input_dim + latent_dim + padded_cols)
    act_bytes = 4 * bb * (2 * hidden_dim + 4 * latent_dim + padded_cols)
    vmem_est = weight_bytes + 2 * tile_io_bytes + 2 * act_bytes + (4 << 20)
    vmem_limit = int(min(max(vmem_est, 32 << 20), int(0.87 * vmem_cap)))

    kernel = functools.partial(vae_fwd_kernel, latent_dim=latent_dim,
                               pad_cols=pad_cols, mxu_dtype=mxu_dtype)

    packed = pl.pallas_call(
        kernel,
        out_shape=out_shape,
        grid_spec=pltpu.PrefetchScalarGridSpec(
            num_scalar_prefetch=0,
            grid=grid,
            in_specs=[
                batch_spec(input_dim),                                   # x
                _single_buffered_spec((input_dim, hidden_dim),
                                      lambda i: (0, 0)),                 # w_in
                _single_buffered_spec((hidden_dim, 2 * latent_dim),
                                      lambda i: (0, 0)),                 # w_mlv
                _single_buffered_spec((latent_dim, hidden_dim),
                                      lambda i: (0, 0)),                 # w_d1
                _single_buffered_spec((hidden_dim, input_dim),
                                      lambda i: (0, 0)),                 # w_d2
                batch_spec(latent_dim),                                  # eps
            ],
            out_specs=batch_spec(padded_cols),    # [z|z_m|z_lv|x_hat|pad]
        ),
        compiler_params=pltpu.CompilerParams(
            dimension_semantics=("parallel",),
            vmem_limit_bytes=vmem_limit,
        ),
        cost_estimate=cost,
    )(x, w_in, w_mlv, w_d1, w_d2, eps)

    z = packed[:, :latent_dim]
    z_m = packed[:, latent_dim:2 * latent_dim]
    z_lv = packed[:, 2 * latent_dim:3 * latent_dim]
    x_hat = packed[:, 3 * latent_dim:3 * latent_dim + input_dim]
    return dict(z=z, z_m=z_m, z_lv=z_lv, x_hat=x_hat)


# --------------------------------------------------------------------------
# Init + pure-JAX reference
# --------------------------------------------------------------------------
def init_vae_params(key, input_dim, hidden_dim, latent_dim):
    """Deterministic init; weights stored as [in_features, out_features]."""
    ks = jax.random.split(key, 5)

    def linear_w(k, fan_in, fan_out):
        # Mirror PyTorch's default Linear init scale (U(-1/sqrt(fan_in), ...)).
        bound = 1.0 / jnp.sqrt(fan_in)
        return jax.random.uniform(k, (fan_in, fan_out), jnp.float32,
                                  minval=-bound, maxval=bound)

    return dict(
        w_in=linear_w(ks[0], input_dim, hidden_dim),    # encoder.input_layer
        w_m=linear_w(ks[1], hidden_dim, latent_dim),    # encoder.z_m_layer
        w_lv=linear_w(ks[2], hidden_dim, latent_dim),   # encoder.z_lv_layer
        w_d1=linear_w(ks[3], latent_dim, hidden_dim),   # decoder.latent_layer
        w_d2=linear_w(ks[4], hidden_dim, input_dim),    # decoder.output_layer
    )


def vae_forward_ref(x, params, eps, *, mxu_dtype=jnp.float32):
    """Pure-JAX reference mirroring the PyTorch forward (use_bias=False).

    `mxu_dtype=jnp.bfloat16` mimics the kernel's matmul operand precision
    (with f32 accumulation) so the bf16 path can be checked tightly.
    """
    c = lambda a: a.astype(mxu_dtype)
    mm = lambda a, w: jnp.dot(c(a), c(w), preferred_element_type=jnp.float32)
    h = jnp.maximum(mm(x, params["w_in"]), 0.0)
    z_m = mm(h, params["w_m"])
    z_lv = mm(h, params["w_lv"])
    z = z_m + eps * jnp.exp(z_lv / 2.0)
    hd = jnp.maximum(mm(z, params["w_d1"]), 0.0)
    x_hat = mm(hd, params["w_d2"])
    return dict(z=z, z_m=z_m, z_lv=z_lv, x_hat=x_hat)


# --------------------------------------------------------------------------
# Self-test
# --------------------------------------------------------------------------
if __name__ == "__main__":
    input_dim, hidden_dim, latent_dim = 32, 64, 16
    names = ("z", "z_m", "z_lv", "x_hat")

    key = jax.random.PRNGKey(0)
    k_x, k_eps, k_p, k_x2, k_eps2 = jax.random.split(key, 5)
    params = init_vae_params(k_p, input_dim, hidden_dim, latent_dim)
    prep_bf16 = prepare_vae_params(params, use_bf16_matmul=True)
    prep_f32 = prepare_vae_params(params, use_bf16_matmul=False)

    # --- Small batch (single grid step) ---
    B = 8
    x = jax.random.normal(k_x, (B, input_dim), jnp.float32)
    eps = jax.random.normal(k_eps, (B, latent_dim), jnp.float32)

    ref_f32 = vae_forward_ref(x, params, eps, mxu_dtype=jnp.float32)
    ref_bf16 = vae_forward_ref(x, params, eps, mxu_dtype=jnp.bfloat16)

    out_bf16 = vae_forward(x, prep_bf16, eps)
    out_bf16 = jax.tree_util.tree_map(jax.block_until_ready, out_bf16)
    for name in names:
        assert out_bf16[name].shape == ref_f32[name].shape, name
        # Tight check vs. a reference using the same operand precision.
        assert jnp.allclose(out_bf16[name], ref_bf16[name],
                            atol=5e-3, rtol=5e-3), name
        # Loose semantic check vs. the pure-f32 reference.
        assert jnp.allclose(out_bf16[name], ref_f32[name],
                            atol=5e-2, rtol=5e-2), name

    out_f32 = vae_forward(x, prep_f32, eps)
    out_f32 = jax.tree_util.tree_map(jax.block_until_ready, out_f32)
    for name in names:
        assert jnp.allclose(out_f32[name], ref_f32[name],
                            atol=1e-5, rtol=1e-5), name

    # --- Larger batch: exercises the tiled (multi-step, even-count) grid ---
    B2 = 64
    x2 = jax.random.normal(k_x2, (B2, input_dim), jnp.float32)
    eps2 = jax.random.normal(k_eps2, (B2, latent_dim), jnp.float32)
    ref2 = vae_forward_ref(x2, params, eps2, mxu_dtype=jnp.float32)
    out2 = vae_forward(x2, prep_f32, eps2)
    out2 = jax.tree_util.tree_map(jax.block_until_ready, out2)
    for name in names:
        assert out2[name].shape == ref2[name].shape, name
        assert jnp.allclose(out2[name], ref2[name],
                            atol=1e-5, rtol=1e-5), name

    print("KERNEL_OK")
</pallas_src>

<mosaic_0001>
module attributes {stable_mosaic.version = 11 : i64} {
  func.func @vae_fwd_kernel(%arg0: i32, %arg1: memref<8x32xf32, #tpu.memory_space<vmem>>, %arg2: memref<32x64xbf16, #tpu.memory_space<vmem>>, %arg3: memref<64x32xbf16, #tpu.memory_space<vmem>>, %arg4: memref<16x64xbf16, #tpu.memory_space<vmem>>, %arg5: memref<64x32xbf16, #tpu.memory_space<vmem>>, %arg6: memref<8x16xf32, #tpu.memory_space<vmem>>, %arg7: memref<8x128xf32, #tpu.memory_space<vmem>>) attributes {dimension_semantics = [#tpu.dimension_semantics<parallel>], iteration_bounds = array<i64: 1>, scalar_prefetch = 0 : i64, scratch_operands = 0 : i64, tpu.core_type = #tpu.core_type<tc>, window_params = [{transform_indices = @transform_0, window_bounds = array<i64: 8, 32>}, {pipeline_mode = #tpu.pipeline_mode<synchronous>, transform_indices = @transform_1, window_bounds = array<i64: 32, 64>}, {pipeline_mode = #tpu.pipeline_mode<synchronous>, transform_indices = @transform_2, window_bounds = array<i64: 64, 32>}, {pipeline_mode = #tpu.pipeline_mode<synchronous>, transform_indices = @transform_3, window_bounds = array<i64: 16, 64>}, {pipeline_mode = #tpu.pipeline_mode<synchronous>, transform_indices = @transform_4, window_bounds = array<i64: 64, 32>}, {transform_indices = @transform_5, window_bounds = array<i64: 8, 16>}, {transform_indices = @transform_6, window_bounds = array<i64: 8, 128>}]} {
    %c0 = arith.constant 0 : index
    %c0_0 = arith.constant 0 : index
    %0 = vector.load %arg1[%c0, %c0_0] : memref<8x32xf32, #tpu.memory_space<vmem>>, vector<8x32xf32>
    %1 = arith.truncf %0 : vector<8x32xf32> to vector<8x32xbf16>
    %c0_1 = arith.constant 0 : index
    %c0_2 = arith.constant 0 : index
    %2 = vector.load %arg2[%c0_1, %c0_2] : memref<32x64xbf16, #tpu.memory_space<vmem>>, vector<32x64xbf16>
    %cst = arith.constant dense<0.000000e+00> : vector<8x64xf32>
    %3 = tpu.matmul %1, %2, %cst {dimension_numbers = #tpu.dot_dimension_numbers<[1], [0], [0], [1], [0, 0, 1, 1], [], []>} : vector<8x32xbf16>, vector<32x64xbf16>, vector<8x64xf32> -> vector<8x64xf32>
    %cst_3 = arith.constant 0.000000e+00 : f32
    %4 = vector.broadcast %cst_3 : f32 to vector<8x64xf32>
    %5 = arith.maximumf %3, %4 : vector<8x64xf32>
    %6 = arith.truncf %5 : vector<8x64xf32> to vector<8x64xbf16>
    %c0_4 = arith.constant 0 : index
    %c0_5 = arith.constant 0 : index
    %7 = vector.load %arg3[%c0_4, %c0_5] : memref<64x32xbf16, #tpu.memory_space<vmem>>, vector<64x32xbf16>
    %cst_6 = arith.constant dense<0.000000e+00> : vector<8x32xf32>
    %8 = tpu.matmul %6, %7, %cst_6 {dimension_numbers = #tpu.dot_dimension_numbers<[1], [0], [0], [1], [0, 0, 1, 1], [], []>} : vector<8x64xbf16>, vector<64x32xbf16>, vector<8x32xf32> -> vector<8x32xf32>
    %9 = vector.extract_strided_slice %8 {offsets = [0, 0], sizes = [8, 16], strides = [1, 1]} : vector<8x32xf32> to vector<8x16xf32>
    %10 = vector.extract_strided_slice %8 {offsets = [0, 16], sizes = [8, 16], strides = [1, 1]} : vector<8x32xf32> to vector<8x16xf32>
    %c0_7 = arith.constant 0 : index
    %c0_8 = arith.constant 0 : index
    %11 = vector.load %arg6[%c0_7, %c0_8] : memref<8x16xf32, #tpu.memory_space<vmem>>, vector<8x16xf32>
    %cst_9 = arith.constant 5.000000e-01 : f32
    %12 = vector.broadcast %cst_9 : f32 to vector<8x16xf32>
    %13 = arith.mulf %10, %12 : vector<8x16xf32>
    %14 = math.exp %13 : vector<8x16xf32>
    %15 = arith.mulf %11, %14 : vector<8x16xf32>
    %16 = arith.addf %9, %15 : vector<8x16xf32>
    %17 = arith.truncf %16 : vector<8x16xf32> to vector<8x16xbf16>
    %c0_10 = arith.constant 0 : index
    %c0_11 = arith.constant 0 : index
    %18 = vector.load %arg4[%c0_10, %c0_11] : memref<16x64xbf16, #tpu.memory_space<vmem>>, vector<16x64xbf16>
    %cst_12 = arith.constant dense<0.000000e+00> : vector<8x64xf32>
    %19 = tpu.matmul %17, %18, %cst_12 {dimension_numbers = #tpu.dot_dimension_numbers<[1], [0], [0], [1], [0, 0, 1, 1], [], []>} : vector<8x16xbf16>, vector<16x64xbf16>, vector<8x64xf32> -> vector<8x64xf32>
    %cst_13 = arith.constant 0.000000e+00 : f32
    %20 = vector.broadcast %cst_13 : f32 to vector<8x64xf32>
    %21 = arith.maximumf %19, %20 : vector<8x64xf32>
    %22 = arith.truncf %21 : vector<8x64xf32> to vector<8x64xbf16>
    %c0_14 = arith.constant 0 : index
    %c0_15 = arith.constant 0 : index
    %23 = vector.load %arg5[%c0_14, %c0_15] : memref<64x32xbf16, #tpu.memory_space<vmem>>, vector<64x32xbf16>
    %cst_16 = arith.constant dense<0.000000e+00> : vector<8x32xf32>
    %24 = tpu.matmul %22, %23, %cst_16 {dimension_numbers = #tpu.dot_dimension_numbers<[1], [0], [0], [1], [0, 0, 1, 1], [], []>} : vector<8x64xbf16>, vector<64x32xbf16>, vector<8x32xf32> -> vector<8x32xf32>
    %cst_17 = arith.constant 0.000000e+00 : f32
    %25 = vector.broadcast %cst_17 : f32 to vector<8x48xf32>
    %26 = tpu.concatenate %16, %9, %10, %24, %25 in 1 : vector<8x16xf32>, vector<8x16xf32>, vector<8x16xf32>, vector<8x32xf32>, vector<8x48xf32> -> vector<8x128xf32>
    %c0_18 = arith.constant 0 : index
    %c0_19 = arith.constant 0 : index
    %27 = vector.load %arg7[%c0_18, %c0_19] : memref<8x128xf32, #tpu.memory_space<vmem>>, vector<8x128xf32>
    tpu.vector_store %arg7[%c0_18, %c0_19], %26 {strides = array<i32>} : memref<8x128xf32, #tpu.memory_space<vmem>>, vector<8x128xf32>,
    return
  }
  func.func @transform_0(%arg0: i32) -> (i32, i32) {
    %c0_i32 = arith.constant 0 : i32
    %c0_i32_0 = arith.constant 0 : i32
    return %arg0, %c0_i32 : i32, i32
  }
  func.func @transform_1(%arg0: i32) -> (i32, i32) {
    %c0_i32 = arith.constant 0 : i32
    %c0_i32_0 = arith.constant 0 : i32
    %c0_i32_1 = arith.constant 0 : i32
    return %c0_i32, %c0_i32_0 : i32, i32
  }
  func.func @transform_2(%arg0: i32) -> (i32, i32) {
    %c0_i32 = arith.constant 0 : i32
    %c0_i32_0 = arith.constant 0 : i32
    %c0_i32_1 = arith.constant 0 : i32
    return %c0_i32, %c0_i32_0 : i32, i32
  }
  func.func @transform_3(%arg0: i32) -> (i32, i32) {
    %c0_i32 = arith.constant 0 : i32
    %c0_i32_0 = arith.constant 0 : i32
    %c0_i32_1 = arith.constant 0 : i32
    return %c0_i32, %c0_i32_0 : i32, i32
  }
  func.func @transform_4(%arg0: i32) -> (i32, i32) {
    %c0_i32 = arith.constant 0 : i32
    %c0_i32_0 = arith.constant 0 : i32
    %c0_i32_1 = arith.constant 0 : i32
    return %c0_i32, %c0_i32_0 : i32, i32
  }
  func.func @transform_5(%arg0: i32) -> (i32, i32) {
    %c0_i32 = arith.constant 0 : i32
    %c0_i32_0 = arith.constant 0 : i32
    return %arg0, %c0_i32 : i32, i32
  }
  func.func @transform_6(%arg0: i32) -> (i32, i32) {
    %c0_i32 = arith.constant 0 : i32
    %c0_i32_0 = arith.constant 0 : i32
    return %arg0, %c0_i32 : i32, i32
  }
}

</mosaic_0001>

<llo_original>
// kernel: tpu_custom_call.1
$region0: #{tpu_custom_call.1}
  #allocation0 [shape = 'u32[]', space=smem, size = 0x4, offset = 0x4, fixed_abs, tag = 'smem constant byte address 0x4 - core index']
  #allocation1 [shape = 'u32[72,128]{1,0:T(1,128)}', space=vmem, size = 0x9000, scoped, tag = 'internal scratch']
  %s0 = inlined_call_operand.vmem [shape: f32[8,32], index: 0, kind: input, shape index: {}]
  %s1 = inlined_call_operand.vmem [shape: bf16[32,64], index: 1, kind: input, shape index: {}]
  %s2 = inlined_call_operand.vmem [shape: bf16[64,32], index: 2, kind: input, shape index: {}]
  %s3 = inlined_call_operand.vmem [shape: bf16[16,64], index: 3, kind: input, shape index: {}]
  %s4 = inlined_call_operand.vmem [shape: bf16[64,32], index: 4, kind: input, shape index: {}]
  %s5 = inlined_call_operand.vmem [shape: f32[8,16], index: 5, kind: input, shape index: {}]
  %s6 = inlined_call_operand.hbm [shape: f32[8,128], index: 6, kind: output, shape index: {}]
  %s7 = sld [smem:[#allocation0]]
  $region34: #{tpu_custom_call.1} parent=0
    _
  %s9 = ssub.s32 1, %s7
  %s10 = scalar_select 0, %s9, %s7
  $region1: #{tpu_custom_call.1} parent=0
    #allocation2 [shape = 'u8[4096]{0}', space=vmem, size = 0x1000, scoped, tag = 'output window, operand 0, single buffered']
    #allocation3 [shape = 's32[1]{0}', space=sflag, size = 0x4, scoped, tag = 'scoped memory for tpu_custom_call.1']
    %11 = vsyncpa [#allocation3], 0
    // Predicated region
    $region2: #{tpu_custom_call.1} parent=1 // pred_check
      _
    $region3: #{tpu_custom_call.1} parent=1 // pred_check_branch
      %13 = sbr.rel (0) target = $region5
    $region4: #{tpu_custom_call.1} parent=1 // pred_region
      _
    $region5: #{tpu_custom_call.1} parent=1 // pred_fallthru
      _
    // Predicated region
    $region6: #{tpu_custom_call.1} parent=1 // pred_check
      _
    $region7: #{tpu_custom_call.1} parent=1 // pred_check_branch
      %15 = sbr.rel (0) target = $region9
    $region8: #{tpu_custom_call.1} parent=1 // pred_region
      _
    $region9: #{tpu_custom_call.1} parent=1 // pred_fallthru
      _
    // Predicated region
    $region10: #{tpu_custom_call.1} parent=1 // pred_check
      _
    $region11: #{tpu_custom_call.1} parent=1 // pred_check_branch
      %17 = sbr.rel (0) target = $region13
    $region12: #{tpu_custom_call.1} parent=1 // pred_region
      _
    $region13: #{tpu_custom_call.1} parent=1 // pred_fallthru
      _
    // Predicated region
    $region14: #{tpu_custom_call.1} parent=1 // pred_check
      _
    $region15: #{tpu_custom_call.1} parent=1 // pred_check_branch
      %19 = sbr.rel (0) target = $region17
    $region16: #{tpu_custom_call.1} parent=1 // pred_region
      _
    $region17: #{tpu_custom_call.1} parent=1 // pred_fallthru
      _
    // Predicated region
    $region18: #{tpu_custom_call.1} parent=1 // pred_check
      _
    $region19: #{tpu_custom_call.1} parent=1 // pred_check_branch
      %21 = sbr.rel (0) target = $region21
    $region20: #{tpu_custom_call.1} parent=1 // pred_region
      _
    $region21: #{tpu_custom_call.1} parent=1 // pred_fallthru
      _
    // Predicated region
    $region22: #{tpu_custom_call.1} parent=1 // pred_check
      _
    $region23: #{tpu_custom_call.1} parent=1 // pred_check_branch
      %23 = sbr.rel (0) target = $region25
    $region24: #{tpu_custom_call.1} parent=1 // pred_region
      _
    $region25: #{tpu_custom_call.1} parent=1 // pred_fallthru
      _
    %v25 = vld [vmem:[%s0] sm:$0xff]
    %v26 = vpack.c.bf16 %v25, %v25
    %v27 = vld [vmem:[%s1] sm:$0xf]
    %v28 = vld [vmem:[%s1 + $0x4] sm:$0xf]
    %v29 = vld [vmem:[%s1 + $0x8] sm:$0xf]
    %v30 = vld [vmem:[%s1 + $0xc] sm:$0xf]
    %v35 = vunpack.c.l.b16 %v27
    %v36 = vunpack.c.l.b16 %v28
    %v37 = vunpack.c.l.b16 %v29
    %v38 = vunpack.c.l.b16 %v30
    %v39 = vpack.c.b16 %v36, %v35
    %v40 = vpack.c.b16 %v38, %v37
    %vm43 = vcmask 261120
    %v45 = vsel %vm43, %v26, 0
    %47 = vmatpush.bf16.msra.mxu0 0
    %48 = vmatpush.bf16.msra.mxu0 0
    %49 = vmatpush.bf16.msra.mxu0 0
    %50 = vmatpush.bf16.msra.mxu0 0
    %51 = vmatpush.bf16.msra.mxu0 0
    %52 = vmatpush.bf16.msra.mxu0 0
    %53 = vmatpush.bf16.msra.mxu0 %v40
    %54 = vmatpush.bf16.msra.mxu0 %v39
    %55 = vmatmul.bf16.gmra.mxu0 %v45
    %v56 = vpop.f32.mrf.mxu0
    %v57 = vadd.f32 0.0, %v56
    %v58 = vpop.f32.mrf.mxu0
    %59 = vdwg.mxu0
    %v60 = vmax.f32 %v57, 0.0
    %v61 = vpack.c.bf16 %v60, %v60
    %v62 = vld [vmem:[%s2] sm:$0xf]
    %v63 = vld [vmem:[%s2 + $0x4] sm:$0xf]
    %v64 = vld [vmem:[%s2 + $0x8] sm:$0xf]
    %v65 = vld [vmem:[%s2 + $0xc] sm:$0xf]
    %v66 = vld [vmem:[%s2 + $0x10] sm:$0xf]
    %v67 = vld [vmem:[%s2 + $0x14] sm:$0xf]
    %v68 = vld [vmem:[%s2 + $0x18] sm:$0xf]
    %v69 = vld [vmem:[%s2 + $0x1c] sm:$0xf]
    %v78 = vunpack.c.l.b16 %v62
    %v79 = vunpack.c.l.b16 %v63
    %v80 = vunpack.c.l.b16 %v64
    %v81 = vunpack.c.l.b16 %v65
    %v82 = vunpack.c.l.b16 %v66
    %v83 = vunpack.c.l.b16 %v67
    %v84 = vunpack.c.l.b16 %v68
    %v85 = vunpack.c.l.b16 %v69
    %v86 = vpack.c.b16 %v79, %v78
    %v87 = vpack.c.b16 %v81, %v80
    %v88 = vpack.c.b16 %v83, %v82
    %v89 = vpack.c.b16 %v85, %v84
    %vm94 = vcmask 523264
    %v96 = vsel %vm94, %v61, 0
    %98 = vmatpush.bf16.msra.mxu0 0
    %99 = vmatpush.bf16.msra.mxu0 0
    %100 = vmatpush.bf16.msra.mxu0 0
    %101 = vmatpush.bf16.msra.mxu0 0
    %102 = vmatpush.bf16.msra.mxu0 %v89
    %103 = vmatpush.bf16.msra.mxu0 %v88
    %104 = vmatpush.bf16.msra.mxu0 %v87
    %105 = vmatpush.bf16.msra.mxu0 %v86
    %106 = vmatmul.bf16.gmra.mxu0 %v96
    %v107 = vpop.f32.mrf.mxu0
    %v108 = vadd.f32 0.0, %v107
    %v109 = vpop.f32.mrf.mxu0
    %110 = vdwg.mxu0
    %v111 = vld [vmem:[%s5] sm:$0xff]
    %v112 = vmul.f32 %v108, 0.5
    %v113 = vmul.f32 %v112, 1.442695
    %v114 = vpow.pop %v113
    %116 = vrot.lane.b32.xlu0 %v114, 112
    %v117 = vpop.permute.xlu0 %116
    %v119 = vmul.f32 %v111, %v117
    %v120 = vadd.f32 %v108, %v119
    %v121 = vpack.c.bf16 %v120, %v120
    %v122 = vld [vmem:[%s3] sm:$0xf]
    %v123 = vld [vmem:[%s3 + $0x4] sm:$0xf]
    %v126 = vunpack.c.l.b16 %v122
    %v127 = vunpack.c.l.b16 %v123
    %v128 = vpack.c.b16 %v127, %v126
    %vm130 = vcmask 130048
    %v132 = vsel %vm130, %v121, 0
    %134 = vmatpush.bf16.msra.mxu0 0
    %135 = vmatpush.bf16.msra.mxu0 0
    %136 = vmatpush.bf16.msra.mxu0 0
    %137 = vmatpush.bf16.msra.mxu0 0
    %138 = vmatpush.bf16.msra.mxu0 0
    %139 = vmatpush.bf16.msra.mxu0 0
    %140 = vmatpush.bf16.msra.mxu0 0
    %141 = vmatpush.bf16.msra.mxu0 %v128
    %142 = vmatmul.bf16.gmra.mxu0 %v132
    %v143 = vpop.f32.mrf.mxu0
    %v144 = vadd.f32 0.0, %v143
    %v145 = vpop.f32.mrf.mxu0
    %146 = vdwg.mxu0
    %v147 = vmax.f32 %v144, 0.0
    %v148 = vpack.c.bf16 %v147, %v147
    %v149 = vld [vmem:[%s4] sm:$0xf]
    %v150 = vld [vmem:[%s4 + $0x4] sm:$0xf]
    %v151 = vld [vmem:[%s4 + $0x8] sm:$0xf]
    %v152 = vld [vmem:[%s4 + $0xc] sm:$0xf]
    %v153 = vld [vmem:[%s4 + $0x10] sm:$0xf]
    %v154 = vld [vmem:[%s4 + $0x14] sm:$0xf]
    %v155 = vld [vmem:[%s4 + $0x18] sm:$0xf]
    %v156 = vld [vmem:[%s4 + $0x1c] sm:$0xf]
    %v165 = vunpack.c.l.b16 %v149
    %v166 = vunpack.c.l.b16 %v150
    %v167 = vunpack.c.l.b16 %v151
    %v168 = vunpack.c.l.b16 %v152
    %v169 = vunpack.c.l.b16 %v153
    %v170 = vunpack.c.l.b16 %v154
    %v171 = vunpack.c.l.b16 %v155
    %v172 = vunpack.c.l.b16 %v156
    %v173 = vpack.c.b16 %v166, %v165
    %v174 = vpack.c.b16 %v168, %v167
    %v175 = vpack.c.b16 %v170, %v169
    %v176 = vpack.c.b16 %v172, %v171
    %v182 = vsel %vm94, %v148, 0
    %184 = vmatpush.bf16.msra.mxu0 0
    %185 = vmatpush.bf16.msra.mxu0 0
    %186 = vmatpush.bf16.msra.mxu0 0
    %187 = vmatpush.bf16.msra.mxu0 0
    %188 = vmatpush.bf16.msra.mxu0 %v176
    %189 = vmatpush.bf16.msra.mxu0 %v175
    %190 = vmatpush.bf16.msra.mxu0 %v174
    %191 = vmatpush.bf16.msra.mxu0 %v173
    %192 = vmatmul.bf16.gmra.mxu0 %v182
    %v193 = vpop.f32.mrf.mxu0
    %v194 = vadd.f32 0.0, %v193
    %v195 = vpop.f32.mrf.mxu0
    %196 = vdwg.mxu0
    %198 = vrot.lane.b32.xlu0 %v108, 16
    %v199 = vpop.permute.xlu0 %198
    %202 = vrot.lane.b32.xlu0 %v194, 48
    %v203 = vpop.permute.xlu0 %202
    %v205 = vsel %vm130, %v120, %v199
    %v206 = vsel %vm43, %v205, %v199
    %vm207 = vcmask 392192
    %v208 = vsel %vm207, %v206, %v203
    %vm209 = vcmask 654336
    %v210 = vsel %vm209, %v208, 0.0
    %211 = vst [vmem:[#allocation2] sm:$0xff] %v210
    // Predicated region
    $region26: #{tpu_custom_call.1} parent=1 // pred_check
      _
    $region27: #{tpu_custom_call.1} parent=1 // pred_check_branch
      %213 = sbr.rel (0) target = $region29
    $region28: #{tpu_custom_call.1} parent=1 // pred_region
      %215 = vsyncadd [#allocation3], 0
      %s217 = sshll.u32 [#allocation2], 4
      %s218 = int_to_ptr.vmem [resolvable:$true] %s217
      %s219 = sshll.u32 %s6, 4
      %s220 = int_to_ptr.hbm [resolvable:$true] %s219
      %222 = dma.vmem_to_hbm [thread:$0]  %s218, 128, %s220, [#allocation3]
    $region29: #{tpu_custom_call.1} parent=1 // pred_fallthru
      _
    // Predicated region
    $region30: #{tpu_custom_call.1} parent=1 // pred_check
      _
    $region31: #{tpu_custom_call.1} parent=1 // pred_check_branch
      %224 = sbr.rel (0) target = $region33
    $region32: #{tpu_custom_call.1} parent=1 // pred_region
      %226 = dma.done [#allocation3], 128
    $region33: #{tpu_custom_call.1} parent=1 // pred_fallthru
      _
    %227 = vsyncpa [#allocation3], 1

</llo_original>
